<compile_context>
chip_gen: v5e
topology: v5e:2x2
jax: 0.10.0
libtpu: 0.0.40
codegen_flags: <defaults>
</compile_context>

<pallas_src>
import math

import numpy as np
import jax
import jax.numpy as jnp
from jax.experimental import pallas as pl
from jax.experimental.pallas import tpu as pltpu


def _round_up(x, m):
    return ((x + m - 1) // m) * m


def _sublane_pack(dtype):
    nbytes = np.dtype(dtype).itemsize
    if nbytes >= 4:
        return 8
    if nbytes == 2:
        return 16
    return 32


def _vmem_budget():
    """Generation-aware (tile budget, scoped-VMEM limit) in bytes."""
    try:
        cap = int(getattr(pltpu.get_tpu_info(), "vmem_capacity_bytes", 64 << 20))
    except Exception:
        cap = 64 << 20
    if cap >= (100 << 20):            # v5e / v6e: 128 MiB physical VMEM
        return 64 << 20, 96 << 20
    return 24 << 20, 48 << 20         # v7x: 64 MiB physical VMEM


# ----------------------------- kernels ---------------------------------------


def _make_kernel(merged):
    def kernel(h_ref, d_ref, u_ref, o_ref):
        # h_ref: (tm, in)  in the ORIGINAL hidden dtype
        # d_ref: (in, rpad), u_ref: (rpad, out)  pre-transposed, scale folded, rank padded
        wdt = d_ref.dtype
        h = h_ref[...]
        if h.dtype != wdt:
            h = h.astype(wdt)     # in-kernel cast (VPU): no extra wrapper HBM round-trip
        if merged:
            # Rebuild the tiny W_eff on the MXU each step (memory-bound regime -> free),
            # avoiding any W_eff HBM traffic and any cross-core scratch-init hazard.
            w = jnp.dot(d_ref[...], u_ref[...],
                        preferred_element_type=jnp.float32).astype(wdt)
            o_ref[...] = jnp.dot(h, w,
                                 preferred_element_type=jnp.float32).astype(o_ref.dtype)
        else:
            dh = jnp.dot(h, d_ref[...], preferred_element_type=jnp.float32)  # (tm, rpad)
            o_ref[...] = jnp.dot(dh.astype(wdt), u_ref[...],
                                 preferred_element_type=jnp.float32).astype(o_ref.dtype)
    return kernel


# ----------------------------- wrapper ----------------------------------------


def palette_lora_forward(hidden_states, color_palette, down_w, up_w, *,
                         rank, network_alpha=None, tm=None, merge_weights=None):
    """hidden_states: (..., in_features); color_palette: anything with 15 elements.

    down_w: (in_features*rank, 15)  (nn.Linear weight layout)
    up_w:   (rank*out_features, 15)
    """
    orig_dtype = hidden_states.dtype
    w_dtype = down_w.dtype
    in_features = down_w.shape[0] // rank
    out_features = up_w.shape[0] // rank

    # --- glue: hyper-network projections (tiny matvecs over 15 palette values) ---
    cp = color_palette.reshape(1, 5 * 3).astype(w_dtype)
    down = (cp @ down_w.T).reshape(rank, in_features)        # (rank, in_features)
    up = (cp @ up_w.T).reshape(out_features, rank)           # (out_features, rank)
    scale = 1.0 if network_alpha is None else float(network_alpha) / float(rank)

    # bf16 hidden -> bf16 MXU operands with f32 accumulation; everything else uses f32
    # weights (sub-32-bit non-bf16 inputs are cast inside the kernel).
    compute_dtype = jnp.bfloat16 if orig_dtype == jnp.bfloat16 else jnp.float32
    w_item = np.dtype(compute_dtype).itemsize
    h_item = np.dtype(orig_dtype).itemsize
    o_item = h_item

    # Lane-dense rank padding (rank << 128): MXU pads to 128-deep tiles anyway; zero
    # padding keeps the (tm, rank) intermediate / in-kernel W_eff build layout clean.
    rpad = _round_up(max(rank, 1), 128)
    d_eff = jnp.pad(down.T, ((0, 0), (0, rpad - rank))).astype(compute_dtype)       # (in, rpad)
    u_eff = jnp.pad(up.T * scale, ((0, rpad - rank), (0, 0))).astype(compute_dtype)  # (rpad, out)

    # --- flatten leading dims; keep hidden in its ORIGINAL dtype (cast in-kernel) ---
    lead = hidden_states.shape[:-1]
    M = math.prod(lead) if lead else 1
    h2d = hidden_states.reshape(M, in_features)

    budget, vmem_limit = _vmem_budget()

    # --- merged vs chained: roofline gate, not just "fits VMEM" ---
    if merge_weights is None:
        if compute_dtype != jnp.bfloat16:
            merge_weights = False            # keep f32 inputs on the memory-bound chain
        else:
            # FLOP per HBM byte per hidden row for the merged dense matmul.
            intensity = (2.0 * in_features * out_features) / (
                in_features * h_item + out_features * o_item)
            ridge = 240.0                    # conservative bf16 ridge (v5e ~197TF/s / ~0.82TB/s)
            merge_weights = (intensity <= 0.5 * ridge and
                             in_features * out_features * (w_item + 4) <= (4 << 20))

    weight_bytes = (d_eff.size + u_eff.size) * w_item * 2        # (conservatively) double-buffered
    extra = in_features * out_features * (w_item + 4) if merge_weights else 0
    per_row = 2 * (in_features * h_item + out_features * o_item) + (0 if merge_weights else rpad * 4)

    # --- row tile: big enough for the HBM roofline, small enough for >= ~8 grid steps ---
    sub = _sublane_pack(orig_dtype)
    align = 128 if M >= 128 else sub
    if tm is None:
        tm_vmem = max(align, (budget - weight_bytes - extra) // max(per_row, 1))
        tm_grid = _round_up(max(1, -(-M // 8)), align)           # keep the pipeline populated
        tm = min(tm_vmem, tm_grid, 1024)
    tm = min(tm, _round_up(M, align))
    tm = max(align, (tm // align) * align)

    grid = (pl.cdiv(M, tm),)
    out2d = pl.pallas_call(
        _make_kernel(bool(merge_weights)),
        out_shape=jax.ShapeDtypeStruct((M, out_features), orig_dtype),
        grid_spec=pltpu.PrefetchScalarGridSpec(
            num_scalar_prefetch=0,
            grid=grid,
            in_specs=[
                pl.BlockSpec((tm, in_features), lambda i: (i, 0)),
                pl.BlockSpec((in_features, rpad), lambda i: (0, 0)),
                pl.BlockSpec((rpad, out_features), lambda i: (0, 0)),
            ],
            out_specs=pl.BlockSpec((tm, out_features), lambda i: (i, 0)),
        ),
        compiler_params=pltpu.CompilerParams(
            dimension_semantics=("parallel",),
            vmem_limit_bytes=vmem_limit,
        ),
    )(h2d, d_eff, u_eff)

    return out2d.reshape(*lead, out_features)


# ----------------------------- reference ---------------------------------------


def palette_lora_reference(hidden_states, color_palette, down_w, up_w, *,
                           rank, network_alpha=None):
    """Faithful (f32-weight) reference matching the PyTorch module."""
    orig_dtype = hidden_states.dtype
    w_dtype = down_w.dtype
    in_features = down_w.shape[0] // rank
    out_features = up_w.shape[0] // rank
    cp = color_palette.reshape(1, 15).astype(w_dtype)
    down = (cp @ down_w.T).reshape(rank, in_features)
    up = (cp @ up_w.T).reshape(out_features, rank)
    dh = hidden_states.astype(w_dtype) @ down.T
    uh = dh @ up.T
    if network_alpha is not None:
        uh = uh * (network_alpha / rank)
    return uh.astype(orig_dtype)


if __name__ == "__main__":
    # Small shapes consistent with the module:
    batch, seq = 2, 8
    in_features, out_features, rank = 32, 32, 4
    network_alpha = 8.0

    key = jax.random.PRNGKey(0)
    k_h, k_p, k_dw, k_uw, k_h2 = jax.random.split(key, 5)

    hidden_states = jax.random.normal(k_h, (batch, seq, in_features), jnp.bfloat16)
    color_palette = jax.random.uniform(k_p, (5, 3), jnp.float32)

    # Parameter init per the module's __init__:
    #   down.weight ~ Normal(std=1/rank), shape (in_features*rank, 15)
    #   up.weight   = zeros,              shape (rank*out_features, 15)
    down_w = jax.random.normal(k_dw, (in_features * rank, 15), jnp.float32) * (1.0 / rank)
    up_w = jnp.zeros((rank * out_features, 15), jnp.float32)

    # --- case 1: module default init (up == 0 -> exactly zero output), merged path ---
    out = palette_lora_forward(hidden_states, color_palette, down_w, up_w,
                               rank=rank, network_alpha=network_alpha)
    jax.block_until_ready(out)
    ref = palette_lora_reference(hidden_states, color_palette, down_w, up_w,
                                 rank=rank, network_alpha=network_alpha)
    assert out.shape == (batch, seq, out_features)
    assert out.dtype == hidden_states.dtype
    assert jnp.allclose(out.astype(jnp.float32), ref.astype(jnp.float32),
                        atol=1e-2, rtol=1e-2)

    # --- case 2: non-zero "up" so the numerics are exercised (merged, in-kernel W_eff) ---
    up_w_nz = jax.random.normal(k_uw, (rank * out_features, 15), jnp.float32) * 0.05
    out2 = palette_lora_forward(hidden_states, color_palette, down_w, up_w_nz,
                                rank=rank, network_alpha=network_alpha)
    jax.block_until_ready(out2)
    ref2 = palette_lora_reference(hidden_states, color_palette, down_w, up_w_nz,
                                  rank=rank, network_alpha=network_alpha)
    # bf16 MXU operands + bf16 output vs the f32-weight reference -> relaxed tolerance.
    assert jnp.allclose(out2.astype(jnp.float32), ref2.astype(jnp.float32),
                        atol=5e-2, rtol=5e-2)

    # --- case 3: chained rank-padded path + M not divisible by tm (tail masking) ---
    hs_long = jax.random.normal(k_h2, (batch, 40, in_features), jnp.bfloat16)   # M = 80
    out3 = palette_lora_forward(hs_long, color_palette, down_w, up_w_nz,
                                rank=rank, network_alpha=network_alpha,
                                tm=32, merge_weights=False)
    jax.block_until_ready(out3)
    ref3 = palette_lora_reference(hs_long, color_palette, down_w, up_w_nz,
                                  rank=rank, network_alpha=network_alpha)
    assert out3.shape == (batch, 40, out_features)
    assert jnp.allclose(out3.astype(jnp.float32), ref3.astype(jnp.float32),
                        atol=5e-2, rtol=5e-2)

    # --- case 4: f32 hidden states -> chained path automatically, f32 operands ---
    hs_f32 = jax.random.normal(k_h2, (batch, seq, in_features), jnp.float32)
    out4 = palette_lora_forward(hs_f32, color_palette, down_w, up_w_nz,
                                rank=rank, network_alpha=network_alpha)
    jax.block_until_ready(out4)
    ref4 = palette_lora_reference(hs_f32, color_palette, down_w, up_w_nz,
                                  rank=rank, network_alpha=network_alpha)
    assert out4.dtype == jnp.float32
    assert jnp.allclose(out4, ref4, atol=1e-4, rtol=1e-4)

    print("KERNEL_OK")
</pallas_src>

<mosaic_0001>
module attributes {stable_mosaic.version = 11 : i64} {
  func.func @kernel(%arg0: i32, %arg1: memref<16x32xbf16, #tpu.memory_space<vmem>>, %arg2: memref<32x128xbf16, #tpu.memory_space<vmem>>, %arg3: memref<128x32xbf16, #tpu.memory_space<vmem>>, %arg4: memref<16x32xbf16, #tpu.memory_space<vmem>>) attributes {dimension_semantics = [#tpu.dimension_semantics<parallel>], iteration_bounds = array<i64: 1>, scalar_prefetch = 0 : i64, scratch_operands = 0 : i64, tpu.core_type = #tpu.core_type<tc>, window_params = [{transform_indices = @transform_0, window_bounds = array<i64: 16, 32>}, {pipeline_mode = #tpu.pipeline_mode<synchronous>, transform_indices = @transform_1, window_bounds = array<i64: 32, 128>}, {pipeline_mode = #tpu.pipeline_mode<synchronous>, transform_indices = @transform_2, window_bounds = array<i64: 128, 32>}, {transform_indices = @transform_3, window_bounds = array<i64: 16, 32>}]} {
    %c0 = arith.constant 0 : index
    %c0_0 = arith.constant 0 : index
    %0 = vector.load %arg1[%c0, %c0_0] : memref<16x32xbf16, #tpu.memory_space<vmem>>, vector<16x32xbf16>
    %c0_1 = arith.constant 0 : index
    %c0_2 = arith.constant 0 : index
    %1 = vector.load %arg2[%c0_1, %c0_2] : memref<32x128xbf16, #tpu.memory_space<vmem>>, vector<32x128xbf16>
    %c0_3 = arith.constant 0 : index
    %c0_4 = arith.constant 0 : index
    %2 = vector.load %arg3[%c0_3, %c0_4] : memref<128x32xbf16, #tpu.memory_space<vmem>>, vector<128x32xbf16>
    %cst = arith.constant dense<0.000000e+00> : vector<32x32xf32>
    %3 = tpu.matmul %1, %2, %cst {dimension_numbers = #tpu.dot_dimension_numbers<[1], [0], [0], [1], [0, 0, 1, 1], [], []>} : vector<32x128xbf16>, vector<128x32xbf16>, vector<32x32xf32> -> vector<32x32xf32>
    %4 = arith.truncf %3 : vector<32x32xf32> to vector<32x32xbf16>
    %cst_5 = arith.constant dense<0.000000e+00> : vector<16x32xf32>
    %5 = tpu.matmul %0, %4, %cst_5 {dimension_numbers = #tpu.dot_dimension_numbers<[1], [0], [0], [1], [0, 0, 1, 1], [], []>} : vector<16x32xbf16>, vector<32x32xbf16>, vector<16x32xf32> -> vector<16x32xf32>
    %6 = arith.truncf %5 : vector<16x32xf32> to vector<16x32xbf16>
    %c0_6 = arith.constant 0 : index
    %c0_7 = arith.constant 0 : index
    %7 = vector.load %arg4[%c0_6, %c0_7] : memref<16x32xbf16, #tpu.memory_space<vmem>>, vector<16x32xbf16>
    tpu.vector_store %arg4[%c0_6, %c0_7], %6 {strides = array<i32>} : memref<16x32xbf16, #tpu.memory_space<vmem>>, vector<16x32xbf16>,
    return
  }
  func.func @transform_0(%arg0: i32) -> (i32, i32) {
    %c0_i32 = arith.constant 0 : i32
    %c0_i32_0 = arith.constant 0 : i32
    return %arg0, %c0_i32 : i32, i32
  }
  func.func @transform_1(%arg0: i32) -> (i32, i32) {
    %c0_i32 = arith.constant 0 : i32
    %c0_i32_0 = arith.constant 0 : i32
    %c0_i32_1 = arith.constant 0 : i32
    return %c0_i32, %c0_i32_0 : i32, i32
  }
  func.func @transform_2(%arg0: i32) -> (i32, i32) {
    %c0_i32 = arith.constant 0 : i32
    %c0_i32_0 = arith.constant 0 : i32
    %c0_i32_1 = arith.constant 0 : i32
    return %c0_i32, %c0_i32_0 : i32, i32
  }
  func.func @transform_3(%arg0: i32) -> (i32, i32) {
    %c0_i32 = arith.constant 0 : i32
    %c0_i32_0 = arith.constant 0 : i32
    return %arg0, %c0_i32 : i32, i32
  }
}

</mosaic_0001>

<llo_original>
// kernel: tpu_custom_call.1
$region0: #{tpu_custom_call.1}
  #allocation0 [shape = 'u32[]', space=smem, size = 0x4, offset = 0x4, fixed_abs, tag = 'smem constant byte address 0x4 - core index']
  #allocation1 [shape = 'u32[72,128]{1,0:T(1,128)}', space=vmem, size = 0x9000, scoped, tag = 'internal scratch']
  %s0 = inlined_call_operand.vmem [shape: bf16[16,32], index: 0, kind: input, shape index: {}]
  %s1 = inlined_call_operand.vmem [shape: bf16[32,128], index: 1, kind: input, shape index: {}]
  %s2 = inlined_call_operand.vmem [shape: bf16[128,32], index: 2, kind: input, shape index: {}]
  %s3 = inlined_call_operand.hbm [shape: bf16[16,32], index: 3, kind: output, shape index: {}]
  %s4 = sld [smem:[#allocation0]]
  $region22: #{tpu_custom_call.1} parent=0
    _
  %s6 = ssub.s32 1, %s4
  %s7 = scalar_select 0, %s6, %s4
  $region1: #{tpu_custom_call.1} parent=0
    #allocation2 [shape = 'u8[4096]{0}', space=vmem, size = 0x1000, scoped, tag = 'output window, operand 0, single buffered']
    #allocation3 [shape = 's32[1]{0}', space=sflag, size = 0x4, scoped, tag = 'scoped memory for tpu_custom_call.1']
    %8 = vsyncpa [#allocation3], 0
    // Predicated region
    $region2: #{tpu_custom_call.1} parent=1 // pred_check
      _
    $region3: #{tpu_custom_call.1} parent=1 // pred_check_branch
      %10 = sbr.rel (0) target = $region5
    $region4: #{tpu_custom_call.1} parent=1 // pred_region
      _
    $region5: #{tpu_custom_call.1} parent=1 // pred_fallthru
      _
    // Predicated region
    $region6: #{tpu_custom_call.1} parent=1 // pred_check
      _
    $region7: #{tpu_custom_call.1} parent=1 // pred_check_branch
      %12 = sbr.rel (0) target = $region9
    $region8: #{tpu_custom_call.1} parent=1 // pred_region
      _
    $region9: #{tpu_custom_call.1} parent=1 // pred_fallthru
      _
    // Predicated region
    $region10: #{tpu_custom_call.1} parent=1 // pred_check
      _
    $region11: #{tpu_custom_call.1} parent=1 // pred_check_branch
      %14 = sbr.rel (0) target = $region13
    $region12: #{tpu_custom_call.1} parent=1 // pred_region
      _
    $region13: #{tpu_custom_call.1} parent=1 // pred_fallthru
      _
    %v16 = vld [vmem:[%s0] sm:$0xf]
    %v17 = vld [vmem:[%s0 + $0x4] sm:$0xf]
    %v18 = vld [vmem:[%s1] sm:$0xf]
    %v19 = vld [vmem:[%s1 + $0x4] sm:$0xf]
    %v20 = vld [vmem:[%s1 + $0x8] sm:$0xf]
    %v21 = vld [vmem:[%s1 + $0xc] sm:$0xf]
    %v22 = vld [vmem:[%s2] sm:$0xf]
    %v23 = vld [vmem:[%s2 + $0x4] sm:$0xf]
    %v24 = vld [vmem:[%s2 + $0x8] sm:$0xf]
    %v25 = vld [vmem:[%s2 + $0xc] sm:$0xf]
    %v26 = vld [vmem:[%s2 + $0x10] sm:$0xf]
    %v27 = vld [vmem:[%s2 + $0x14] sm:$0xf]
    %v28 = vld [vmem:[%s2 + $0x18] sm:$0xf]
    %v29 = vld [vmem:[%s2 + $0x1c] sm:$0xf]
    %v30 = vld [vmem:[%s2 + $0x20] sm:$0xf]
    %v31 = vld [vmem:[%s2 + $0x24] sm:$0xf]
    %v32 = vld [vmem:[%s2 + $0x28] sm:$0xf]
    %v33 = vld [vmem:[%s2 + $0x2c] sm:$0xf]
    %v34 = vld [vmem:[%s2 + $0x30] sm:$0xf]
    %v35 = vld [vmem:[%s2 + $0x34] sm:$0xf]
    %v36 = vld [vmem:[%s2 + $0x38] sm:$0xf]
    %v37 = vld [vmem:[%s2 + $0x3c] sm:$0xf]
    %v42 = vunpack.c.l.b16 %v18
    %v43 = vunpack.c.l.b16 %v19
    %v44 = vunpack.c.l.b16 %v20
    %v45 = vunpack.c.l.b16 %v21
    %v46 = vpack.c.b16 %v43, %v42
    %v47 = vpack.c.b16 %v45, %v44
    %v66 = vunpack.c.l.b16 %v22
    %v67 = vunpack.c.l.b16 %v23
    %v68 = vunpack.c.l.b16 %v24
    %v69 = vunpack.c.l.b16 %v25
    %v70 = vunpack.c.l.b16 %v26
    %v71 = vunpack.c.l.b16 %v27
    %v72 = vunpack.c.l.b16 %v28
    %v73 = vunpack.c.l.b16 %v29
    %v74 = vunpack.c.l.b16 %v30
    %v75 = vunpack.c.l.b16 %v31
    %v76 = vunpack.c.l.b16 %v32
    %v77 = vunpack.c.l.b16 %v33
    %v78 = vunpack.c.l.b16 %v34
    %v79 = vunpack.c.l.b16 %v35
    %v80 = vunpack.c.l.b16 %v36
    %v81 = vunpack.c.l.b16 %v37
    %v82 = vpack.c.b16 %v67, %v66
    %v83 = vpack.c.b16 %v69, %v68
    %v84 = vpack.c.b16 %v71, %v70
    %v85 = vpack.c.b16 %v73, %v72
    %v86 = vpack.c.b16 %v75, %v74
    %v87 = vpack.c.b16 %v77, %v76
    %v88 = vpack.c.b16 %v79, %v78
    %v89 = vpack.c.b16 %v81, %v80
    %98 = vmatpush.bf16.msra.mxu0 %v89
    %99 = vmatpush.bf16.msra.mxu0 %v88
    %100 = vmatpush.bf16.msra.mxu0 %v87
    %101 = vmatpush.bf16.msra.mxu0 %v86
    %102 = vmatpush.bf16.msra.mxu0 %v85
    %103 = vmatpush.bf16.msra.mxu0 %v84
    %104 = vmatpush.bf16.msra.mxu0 %v83
    %105 = vmatpush.bf16.msra.mxu0 %v82
    %106 = vmatmul.bf16.gmra.mxu0 %v46
    %v107 = vpop.f32.mrf.mxu0
    %v108 = vadd.f32 0.0, %v107
    %v109 = vpop.f32.mrf.mxu0
    %v110 = vadd.f32 0.0, %v109
    %111 = vmatmul.bf16.gmra.mxu0 %v47
    %v112 = vpop.f32.mrf.mxu0
    %v113 = vadd.f32 0.0, %v112
    %v114 = vpop.f32.mrf.mxu0
    %v115 = vadd.f32 0.0, %v114
    %116 = vdwg.mxu0
    %v117 = vpack.c.bf16 %v110, %v108
    %v118 = vpack.c.bf16 %v115, %v113
    %v121 = vunpack.c.l.b16 %v16
    %v122 = vunpack.c.l.b16 %v17
    %v123 = vpack.c.b16 %v122, %v121
    %vm124 = vcmask 261120
    %v126 = vsel %vm124, %v123, 0
    %128 = vmatpush.bf16.msra.mxu0 0
    %129 = vmatpush.bf16.msra.mxu0 0
    %130 = vmatpush.bf16.msra.mxu0 0
    %131 = vmatpush.bf16.msra.mxu0 0
    %132 = vmatpush.bf16.msra.mxu0 0
    %133 = vmatpush.bf16.msra.mxu0 0
    %134 = vmatpush.bf16.msra.mxu0 %v118
    %135 = vmatpush.bf16.msra.mxu0 %v117
    %136 = vmatmul.bf16.gmra.mxu0 %v126
    %v137 = vpop.f32.mrf.mxu0
    %v138 = vadd.f32 0.0, %v137
    %v139 = vpop.f32.mrf.mxu0
    %v140 = vadd.f32 0.0, %v139
    %141 = vdwg.mxu0
    %v142 = vpack.c.bf16 %v138, %v138
    %v143 = vpack.c.bf16 %v140, %v140
    %vm144 = vcmask 257024
    %145 = vst.msk [vmem:[#allocation2] sm:$0xf] %vm144, %v142
    %146 = vst.msk [vmem:[#allocation2 + $0x4] sm:$0xf] %vm144, %v143
    // Predicated region
    $region14: #{tpu_custom_call.1} parent=1 // pred_check
      _
    $region15: #{tpu_custom_call.1} parent=1 // pred_check_branch
      %148 = sbr.rel (0) target = $region17
    $region16: #{tpu_custom_call.1} parent=1 // pred_region
      %150 = vsyncadd [#allocation3], 0
      %s151 = sshll.u32 [#allocation2], 4
      %s152 = int_to_ptr.vmem [resolvable:$true] %s151
      %s153 = sshll.u32 %s3, 4
      %s154 = int_to_ptr.hbm [resolvable:$true] %s153
      %159 = dma.vmem_to_hbm [thread:$0]  %s152, 128, %s154, [#allocation3], 64, 64, 4
    $region17: #{tpu_custom_call.1} parent=1 // pred_fallthru
      _
    // Predicated region
    $region18: #{tpu_custom_call.1} parent=1 // pred_check
      _
    $region19: #{tpu_custom_call.1} parent=1 // pred_check_branch
      %161 = sbr.rel (0) target = $region21
    $region20: #{tpu_custom_call.1} parent=1 // pred_region
      %163 = dma.done [#allocation3], 128
    $region21: #{tpu_custom_call.1} parent=1 // pred_fallthru
      _
    %164 = vsyncpa [#allocation3], 1

</llo_original>
